<compile_context>
chip_gen: v5e
topology: v5e:2x2
jax: 0.10.0
libtpu: 0.0.40
codegen_flags: <defaults>
</compile_context>

<pallas_src>
import functools

import jax
import jax.numpy as jnp
from jax import lax
from jax.experimental import pallas as pl
from jax.experimental.pallas import tpu as pltpu


def _round_up(x, m):
    return ((x + m - 1) // m) * m


def _lstm_tagger_kernel(x_ref, w_ih_ref, w_hh_ref, w_head_ref, smalls_ref,
                        heads_ref, hn_ref, cn_ref, *, O):
    T = x_ref.shape[0]
    H = w_hh_ref.shape[0]
    G = 4 * H
    Lout = w_head_ref.shape[1]

    # --- unpack the consolidated small-operand slab (one DMA instead of five) ---
    b_lstm = smalls_ref[0:1, 0:G]        # (1, 4H) combined LSTM bias (b_ih + b_hh)
    b_head = smalls_ref[1:2, 0:Lout]     # (1, Lout) fused/padded head bias
    h = smalls_ref[2:3, 0:H]             # (1, H) initial hidden state
    c = smalls_ref[3:4, 0:H]             # (1, H) initial cell state

    # --- hoisted input projection: one batched MXU matmul outside the loop ---
    xw = jnp.dot(x_ref[...], w_ih_ref[...],
                 preferred_element_type=jnp.float32) + b_lstm       # (T, 4H)

    w_hh = w_hh_ref[...]                                            # (H, 4H)

    row_idx = lax.broadcasted_iota(jnp.int32, (T, H), 0)
    lstm_out = jnp.zeros((T, H), jnp.float32)                       # register-resident

    # --- fully unrolled recurrence (T static & small) ---
    for t in range(T):
        gates = xw[t:t + 1, :] + jnp.dot(h, w_hh,
                                         preferred_element_type=jnp.float32)  # (1, 4H)
        sig = jax.nn.sigmoid(gates)      # one EUP pass for i/f/o gates
        th = jnp.tanh(gates)             # one EUP pass for g gate
        i_g = sig[:, 0 * H:1 * H]
        f_g = sig[:, 1 * H:2 * H]
        g_g = th[:, 2 * H:3 * H]
        o_g = sig[:, 3 * H:4 * H]
        c = f_g * c + i_g * g_g
        h = o_g * jnp.tanh(c)
        # Place h into row t via a whole-vreg select (keeps lstm_out in vregs).
        lstm_out = jnp.where(row_idx == t, h, lstm_out)

    # --- fused output heads: single lane-dense matmul ---
    head = jnp.dot(lstm_out, w_head_ref[...],
                   preferred_element_type=jnp.float32) + b_head      # (T, Lout)
    col_idx = lax.broadcasted_iota(jnp.int32, (T, Lout), 1)
    is_ep = (col_idx >= O) & (col_idx < O + 2)                       # endpoint columns

    # log_softmax over the 2 endpoint columns, computed full-width with masking.
    ep_logits = jnp.where(is_ep, head, -jnp.inf)
    m = jnp.max(ep_logits, axis=1, keepdims=True)                    # (T, 1)
    ep_exp = jnp.exp(ep_logits - m)                                  # 0 for non-ep cols
    lse = jnp.log(jnp.sum(ep_exp, axis=1, keepdims=True))            # (T, 1)

    # tag columns -> tanh, endpoint columns -> log-probabilities.
    heads_ref[...] = jnp.where(is_ep, head - m - lse, jnp.tanh(head))

    hn_ref[...] = h
    cn_ref[...] = c


def _full_spec(shape):
    n = len(shape)
    return pl.BlockSpec(shape, lambda i, _n=n: (0,) * _n)


def lstm_tagger_forward(sequence, params, hidden_input=None, cell_input=None):
    """Mirrors LSTMTagger.forward. `sequence` has shape (T, E)."""
    T = sequence.shape[0]
    x = sequence.reshape(T, -1).astype(jnp.float32)                  # (T, E)
    H = params["w_hh"].shape[0]
    O = params["w_tag"].shape[1]
    G = 4 * H
    Lout = _round_up(O + 2, 128)                                     # lane-dense head width
    Lsm = max(G, Lout, _round_up(H, 128))                            # small-slab lane width

    # Fused + lane-padded head weights: [hidden2tag | hidden2endpoint | 0-pad].
    w_head = jnp.zeros((H, Lout), jnp.float32)
    w_head = w_head.at[:, :O].set(params["w_tag"].astype(jnp.float32))
    w_head = w_head.at[:, O:O + 2].set(params["w_ep"].astype(jnp.float32))

    # Consolidated small operands: row 0 = combined LSTM bias, row 1 = fused
    # head bias, rows 2/3 = initial hidden / cell state.
    smalls = jnp.zeros((8, Lsm), jnp.float32)
    smalls = smalls.at[0, :G].set(params["b"].reshape(G).astype(jnp.float32))
    smalls = smalls.at[1, :O].set(params["b_tag"].reshape(O).astype(jnp.float32))
    smalls = smalls.at[1, O:O + 2].set(params["b_ep"].reshape(2).astype(jnp.float32))
    if hidden_input is not None and cell_input is not None:
        smalls = smalls.at[2, :H].set(hidden_input.reshape(H).astype(jnp.float32))
        smalls = smalls.at[3, :H].set(cell_input.reshape(H).astype(jnp.float32))

    inputs = (x,
              params["w_ih"].astype(jnp.float32),
              params["w_hh"].astype(jnp.float32),
              w_head,
              smalls)

    out_shapes = (
        jax.ShapeDtypeStruct((T, Lout), jnp.float32),   # lane-dense heads slab
        jax.ShapeDtypeStruct((1, H), jnp.float32),      # hidden_n
        jax.ShapeDtypeStruct((1, H), jnp.float32),      # cell_n
    )

    kernel = functools.partial(_lstm_tagger_kernel, O=O)

    grid_spec = pltpu.PrefetchScalarGridSpec(
        num_scalar_prefetch=0,
        grid=(1,),
        in_specs=[_full_spec(a.shape) for a in inputs],
        out_specs=[_full_spec(s.shape) for s in out_shapes],
    )

    heads, hidden_n, cell_n = pl.pallas_call(
        kernel,
        out_shape=out_shapes,
        grid_spec=grid_spec,
        compiler_params=pltpu.CompilerParams(
            dimension_semantics=("arbitrary",)),
    )(*inputs)

    tag_scores = heads[:, :O]
    endpoint_scores = heads[:, O:O + 2]
    return (tag_scores, endpoint_scores,
            hidden_n.reshape(1, 1, H), cell_n.reshape(1, 1, H))


def init_params(key, embedding_dim, hidden_dim, output_dim):
    """Deterministic parameter init (PyTorch-style uniform(-1/sqrt(H), 1/sqrt(H)))."""
    k = 1.0 / jnp.sqrt(jnp.float32(hidden_dim))
    keys = jax.random.split(key, 8)
    u = lambda kk, shape: jax.random.uniform(kk, shape, jnp.float32, -k, k)
    return {
        # LSTM weights, stored transposed vs. PyTorch so the kernel does x @ W
        "w_ih": u(keys[0], (embedding_dim, 4 * hidden_dim)),
        "w_hh": u(keys[1], (hidden_dim, 4 * hidden_dim)),
        # combined bias: b_ih + b_hh
        "b": u(keys[2], (1, 4 * hidden_dim)) + u(keys[3], (1, 4 * hidden_dim)),
        # hidden2tag
        "w_tag": u(keys[4], (hidden_dim, output_dim)),
        "b_tag": u(keys[5], (1, output_dim)),
        # hidden2endpoint
        "w_ep": u(keys[6], (hidden_dim, 2)),
        "b_ep": u(keys[7], (1, 2)),
    }


def _reference_forward(sequence, params, hidden_input=None, cell_input=None):
    """Pure-JAX reference matching the PyTorch module semantics."""
    T = sequence.shape[0]
    x = sequence.reshape(T, -1).astype(jnp.float32)
    H = params["w_hh"].shape[0]
    h = (jnp.zeros((1, H), jnp.float32) if hidden_input is None
         else hidden_input.reshape(1, H).astype(jnp.float32))
    c = (jnp.zeros((1, H), jnp.float32) if cell_input is None
         else cell_input.reshape(1, H).astype(jnp.float32))

    def step(carry, x_t):
        h, c = carry
        gates = x_t[None, :] @ params["w_ih"] + h @ params["w_hh"] + params["b"]
        i = jax.nn.sigmoid(gates[:, :H])
        f = jax.nn.sigmoid(gates[:, H:2 * H])
        g = jnp.tanh(gates[:, 2 * H:3 * H])
        o = jax.nn.sigmoid(gates[:, 3 * H:])
        c = f * c + i * g
        h = o * jnp.tanh(c)
        return (h, c), h[0]

    (h, c), hs = lax.scan(step, (h, c), x)
    tag = jnp.tanh(hs @ params["w_tag"] + params["b_tag"])
    ep = jax.nn.log_softmax(hs @ params["w_ep"] + params["b_ep"], axis=1)
    return tag, ep, h.reshape(1, 1, H), c.reshape(1, 1, H)


if __name__ == "__main__":
    T, E, H, O = 8, 16, 32, 8   # seq len, embedding_dim, hidden_dim, output_dim

    key = jax.random.PRNGKey(0)
    pkey, xkey = jax.random.split(key)
    params = init_params(pkey, E, H, O)
    sequence = jax.random.normal(xkey, (T, E), jnp.float32)

    fwd = jax.jit(functools.partial(lstm_tagger_forward, params=params))
    tag_scores, endpoint_scores, hidden_n, cell_n = fwd(sequence)
    jax.block_until_ready((tag_scores, endpoint_scores, hidden_n, cell_n))

    assert tag_scores.shape == (T, O)
    assert endpoint_scores.shape == (T, 2)
    assert hidden_n.shape == (1, 1, H)
    assert cell_n.shape == (1, 1, H)
    # log_softmax rows should sum to ~1 in prob space
    assert bool(jnp.allclose(jnp.exp(endpoint_scores).sum(axis=1), 1.0, atol=1e-5))

    # Compare against the pure-JAX reference.
    r_tag, r_ep, r_h, r_c = _reference_forward(sequence, params)
    assert bool(jnp.allclose(tag_scores, r_tag, rtol=1e-3, atol=2e-3))
    assert bool(jnp.allclose(endpoint_scores, r_ep, rtol=1e-3, atol=2e-3))
    assert bool(jnp.allclose(hidden_n, r_h, rtol=1e-3, atol=2e-3))
    assert bool(jnp.allclose(cell_n, r_c, rtol=1e-3, atol=2e-3))

    print("KERNEL_OK")
</pallas_src>

<mosaic_0001>
module attributes {stable_mosaic.version = 11 : i64} {
  func.func @_lstm_tagger_kernel(%arg0: i32, %arg1: memref<8x16xf32, #tpu.memory_space<vmem>>, %arg2: memref<16x128xf32, #tpu.memory_space<vmem>>, %arg3: memref<32x128xf32, #tpu.memory_space<vmem>>, %arg4: memref<32x128xf32, #tpu.memory_space<vmem>>, %arg5: memref<8x128xf32, #tpu.memory_space<vmem>>, %arg6: memref<8x128xf32, #tpu.memory_space<vmem>>, %arg7: memref<1x32xf32, #tpu.memory_space<vmem>>, %arg8: memref<1x32xf32, #tpu.memory_space<vmem>>) attributes {dimension_semantics = [#tpu.dimension_semantics<arbitrary>], iteration_bounds = array<i64: 1>, scalar_prefetch = 0 : i64, scratch_operands = 0 : i64, tpu.core_type = #tpu.core_type<tc>, window_params = [{pipeline_mode = #tpu.pipeline_mode<synchronous>, transform_indices = @transform_0, window_bounds = array<i64: 8, 16>}, {pipeline_mode = #tpu.pipeline_mode<synchronous>, transform_indices = @transform_1, window_bounds = array<i64: 16, 128>}, {pipeline_mode = #tpu.pipeline_mode<synchronous>, transform_indices = @transform_2, window_bounds = array<i64: 32, 128>}, {pipeline_mode = #tpu.pipeline_mode<synchronous>, transform_indices = @transform_3, window_bounds = array<i64: 32, 128>}, {pipeline_mode = #tpu.pipeline_mode<synchronous>, transform_indices = @transform_4, window_bounds = array<i64: 8, 128>}, {pipeline_mode = #tpu.pipeline_mode<synchronous>, transform_indices = @transform_5, window_bounds = array<i64: 8, 128>}, {pipeline_mode = #tpu.pipeline_mode<synchronous>, transform_indices = @transform_6, window_bounds = array<i64: 1, 32>}, {pipeline_mode = #tpu.pipeline_mode<synchronous>, transform_indices = @transform_7, window_bounds = array<i64: 1, 32>}]} {
    %c0 = arith.constant 0 : index
    %c0_0 = arith.constant 0 : index
    %0 = vector.load %arg5[%c0, %c0_0] : memref<8x128xf32, #tpu.memory_space<vmem>>, vector<1x128xf32>
    %c1 = arith.constant 1 : index
    %c0_1 = arith.constant 0 : index
    %1 = vector.load %arg5[%c1, %c0_1] : memref<8x128xf32, #tpu.memory_space<vmem>>, vector<1x128xf32>
    %c2 = arith.constant 2 : index
    %c0_2 = arith.constant 0 : index
    %2 = vector.load %arg5[%c2, %c0_2] : memref<8x128xf32, #tpu.memory_space<vmem>>, vector<1x32xf32>
    %c3 = arith.constant 3 : index
    %c0_3 = arith.constant 0 : index
    %3 = vector.load %arg5[%c3, %c0_3] : memref<8x128xf32, #tpu.memory_space<vmem>>, vector<1x32xf32>
    %c0_4 = arith.constant 0 : index
    %c0_5 = arith.constant 0 : index
    %4 = vector.load %arg1[%c0_4, %c0_5] : memref<8x16xf32, #tpu.memory_space<vmem>>, vector<8x16xf32>
    %c0_6 = arith.constant 0 : index
    %c0_7 = arith.constant 0 : index
    %5 = vector.load %arg2[%c0_6, %c0_7] : memref<16x128xf32, #tpu.memory_space<vmem>>, vector<16x128xf32>
    %cst = arith.constant dense<0.000000e+00> : vector<8x128xf32>
    %6 = tpu.matmul %4, %5, %cst {dimension_numbers = #tpu.dot_dimension_numbers<[1], [0], [0], [1], [0, 0, 1, 1], [], []>} : vector<8x16xf32>, vector<16x128xf32>, vector<8x128xf32> -> vector<8x128xf32>
    %7 = vector.broadcast %0 : vector<1x128xf32> to vector<8x128xf32>
    %8 = arith.addf %6, %7 : vector<8x128xf32>
    %c0_8 = arith.constant 0 : index
    %c0_9 = arith.constant 0 : index
    %9 = vector.load %arg3[%c0_8, %c0_9] : memref<32x128xf32, #tpu.memory_space<vmem>>, vector<32x128xf32>
    %10 = tpu.iota {dimensions = array<i32: 0>} : vector<8x32xi32>
    %cst_10 = arith.constant 0.000000e+00 : f32
    %11 = vector.broadcast %cst_10 : f32 to vector<8x32xf32>
    %12 = vector.extract_strided_slice %8 {offsets = [0, 0], sizes = [1, 128], strides = [1, 1]} : vector<8x128xf32> to vector<1x128xf32>
    %cst_11 = arith.constant dense<0.000000e+00> : vector<1x128xf32>
    %13 = tpu.matmul %2, %9, %cst_11 {dimension_numbers = #tpu.dot_dimension_numbers<[1], [0], [0], [1], [0, 0, 1, 1], [], []>} : vector<1x32xf32>, vector<32x128xf32>, vector<1x128xf32> -> vector<1x128xf32>
    %14 = arith.addf %12, %13 : vector<1x128xf32>
    %15 = arith.negf %14 : vector<1x128xf32>
    %16 = math.exp %15 : vector<1x128xf32>
    %cst_12 = arith.constant 1.000000e+00 : f32
    %17 = vector.broadcast %cst_12 : f32 to vector<1x128xf32>
    %18 = arith.addf %17, %16 : vector<1x128xf32>
    %19 = arith.divf %17, %18 : vector<1x128xf32>
    %20 = math.tanh %14 : vector<1x128xf32>
    %21 = vector.extract_strided_slice %19 {offsets = [0, 0], sizes = [1, 32], strides = [1, 1]} : vector<1x128xf32> to vector<1x32xf32>
    %22 = vector.extract_strided_slice %19 {offsets = [0, 32], sizes = [1, 32], strides = [1, 1]} : vector<1x128xf32> to vector<1x32xf32>
    %23 = vector.extract_strided_slice %20 {offsets = [0, 64], sizes = [1, 32], strides = [1, 1]} : vector<1x128xf32> to vector<1x32xf32>
    %24 = vector.extract_strided_slice %19 {offsets = [0, 96], sizes = [1, 32], strides = [1, 1]} : vector<1x128xf32> to vector<1x32xf32>
    %25 = arith.mulf %22, %3 : vector<1x32xf32>
    %26 = arith.mulf %21, %23 : vector<1x32xf32>
    %27 = arith.addf %25, %26 : vector<1x32xf32>
    %28 = math.tanh %27 : vector<1x32xf32>
    %29 = arith.mulf %24, %28 : vector<1x32xf32>
    %c0_i32 = arith.constant 0 : i32
    %30 = vector.broadcast %c0_i32 : i32 to vector<8x32xi32>
    %31 = arith.cmpi eq, %10, %30 : vector<8x32xi32>
    %32 = vector.shape_cast %29 : vector<1x32xf32> to vector<1x32xf32>
    %33 = vector.broadcast %32 : vector<1x32xf32> to vector<8x32xf32>
    %34 = arith.select %31, %33, %11 : vector<8x32xi1>, vector<8x32xf32>
    %35 = vector.extract_strided_slice %8 {offsets = [1, 0], sizes = [1, 128], strides = [1, 1]} : vector<8x128xf32> to vector<1x128xf32>
    %cst_13 = arith.constant dense<0.000000e+00> : vector<1x128xf32>
    %36 = tpu.matmul %29, %9, %cst_13 {dimension_numbers = #tpu.dot_dimension_numbers<[1], [0], [0], [1], [0, 0, 1, 1], [], []>} : vector<1x32xf32>, vector<32x128xf32>, vector<1x128xf32> -> vector<1x128xf32>
    %37 = arith.addf %35, %36 : vector<1x128xf32>
    %38 = arith.negf %37 : vector<1x128xf32>
    %39 = math.exp %38 : vector<1x128xf32>
    %cst_14 = arith.constant 1.000000e+00 : f32
    %40 = vector.broadcast %cst_14 : f32 to vector<1x128xf32>
    %41 = arith.addf %40, %39 : vector<1x128xf32>
    %42 = arith.divf %40, %41 : vector<1x128xf32>
    %43 = math.tanh %37 : vector<1x128xf32>
    %44 = vector.extract_strided_slice %42 {offsets = [0, 0], sizes = [1, 32], strides = [1, 1]} : vector<1x128xf32> to vector<1x32xf32>
    %45 = vector.extract_strided_slice %42 {offsets = [0, 32], sizes = [1, 32], strides = [1, 1]} : vector<1x128xf32> to vector<1x32xf32>
    %46 = vector.extract_strided_slice %43 {offsets = [0, 64], sizes = [1, 32], strides = [1, 1]} : vector<1x128xf32> to vector<1x32xf32>
    %47 = vector.extract_strided_slice %42 {offsets = [0, 96], sizes = [1, 32], strides = [1, 1]} : vector<1x128xf32> to vector<1x32xf32>
    %48 = arith.mulf %45, %27 : vector<1x32xf32>
    %49 = arith.mulf %44, %46 : vector<1x32xf32>
    %50 = arith.addf %48, %49 : vector<1x32xf32>
    %51 = math.tanh %50 : vector<1x32xf32>
    %52 = arith.mulf %47, %51 : vector<1x32xf32>
    %c1_i32 = arith.constant 1 : i32
    %53 = vector.broadcast %c1_i32 : i32 to vector<8x32xi32>
    %54 = arith.cmpi eq, %10, %53 : vector<8x32xi32>
    %55 = vector.shape_cast %52 : vector<1x32xf32> to vector<1x32xf32>
    %56 = vector.broadcast %55 : vector<1x32xf32> to vector<8x32xf32>
    %57 = arith.select %54, %56, %34 : vector<8x32xi1>, vector<8x32xf32>
    %58 = vector.extract_strided_slice %8 {offsets = [2, 0], sizes = [1, 128], strides = [1, 1]} : vector<8x128xf32> to vector<1x128xf32>
    %cst_15 = arith.constant dense<0.000000e+00> : vector<1x128xf32>
    %59 = tpu.matmul %52, %9, %cst_15 {dimension_numbers = #tpu.dot_dimension_numbers<[1], [0], [0], [1], [0, 0, 1, 1], [], []>} : vector<1x32xf32>, vector<32x128xf32>, vector<1x128xf32> -> vector<1x128xf32>
    %60 = arith.addf %58, %59 : vector<1x128xf32>
    %61 = arith.negf %60 : vector<1x128xf32>
    %62 = math.exp %61 : vector<1x128xf32>
    %cst_16 = arith.constant 1.000000e+00 : f32
    %63 = vector.broadcast %cst_16 : f32 to vector<1x128xf32>
    %64 = arith.addf %63, %62 : vector<1x128xf32>
    %65 = arith.divf %63, %64 : vector<1x128xf32>
    %66 = math.tanh %60 : vector<1x128xf32>
    %67 = vector.extract_strided_slice %65 {offsets = [0, 0], sizes = [1, 32], strides = [1, 1]} : vector<1x128xf32> to vector<1x32xf32>
    %68 = vector.extract_strided_slice %65 {offsets = [0, 32], sizes = [1, 32], strides = [1, 1]} : vector<1x128xf32> to vector<1x32xf32>
    %69 = vector.extract_strided_slice %66 {offsets = [0, 64], sizes = [1, 32], strides = [1, 1]} : vector<1x128xf32> to vector<1x32xf32>
    %70 = vector.extract_strided_slice %65 {offsets = [0, 96], sizes = [1, 32], strides = [1, 1]} : vector<1x128xf32> to vector<1x32xf32>
    %71 = arith.mulf %68, %50 : vector<1x32xf32>
    %72 = arith.mulf %67, %69 : vector<1x32xf32>
    %73 = arith.addf %71, %72 : vector<1x32xf32>
    %74 = math.tanh %73 : vector<1x32xf32>
    %75 = arith.mulf %70, %74 : vector<1x32xf32>
    %c2_i32 = arith.constant 2 : i32
    %76 = vector.broadcast %c2_i32 : i32 to vector<8x32xi32>
    %77 = arith.cmpi eq, %10, %76 : vector<8x32xi32>
    %78 = vector.shape_cast %75 : vector<1x32xf32> to vector<1x32xf32>
    %79 = vector.broadcast %78 : vector<1x32xf32> to vector<8x32xf32>
    %80 = arith.select %77, %79, %57 : vector<8x32xi1>, vector<8x32xf32>
    %81 = vector.extract_strided_slice %8 {offsets = [3, 0], sizes = [1, 128], strides = [1, 1]} : vector<8x128xf32> to vector<1x128xf32>
    %cst_17 = arith.constant dense<0.000000e+00> : vector<1x128xf32>
    %82 = tpu.matmul %75, %9, %cst_17 {dimension_numbers = #tpu.dot_dimension_numbers<[1], [0], [0], [1], [0, 0, 1, 1], [], []>} : vector<1x32xf32>, vector<32x128xf32>, vector<1x128xf32> -> vector<1x128xf32>
    %83 = arith.addf %81, %82 : vector<1x128xf32>
    %84 = arith.negf %83 : vector<1x128xf32>
    %85 = math.exp %84 : vector<1x128xf32>
    %cst_18 = arith.constant 1.000000e+00 : f32
    %86 = vector.broadcast %cst_18 : f32 to vector<1x128xf32>
    %87 = arith.addf %86, %85 : vector<1x128xf32>
    %88 = arith.divf %86, %87 : vector<1x128xf32>
    %89 = math.tanh %83 : vector<1x128xf32>
    %90 = vector.extract_strided_slice %88 {offsets = [0, 0], sizes = [1, 32], strides = [1, 1]} : vector<1x128xf32> to vector<1x32xf32>
    %91 = vector.extract_strided_slice %88 {offsets = [0, 32], sizes = [1, 32], strides = [1, 1]} : vector<1x128xf32> to vector<1x32xf32>
    %92 = vector.extract_strided_slice %89 {offsets = [0, 64], sizes = [1, 32], strides = [1, 1]} : vector<1x128xf32> to vector<1x32xf32>
    %93 = vector.extract_strided_slice %88 {offsets = [0, 96], sizes = [1, 32], strides = [1, 1]} : vector<1x128xf32> to vector<1x32xf32>
    %94 = arith.mulf %91, %73 : vector<1x32xf32>
    %95 = arith.mulf %90, %92 : vector<1x32xf32>
    %96 = arith.addf %94, %95 : vector<1x32xf32>
    %97 = math.tanh %96 : vector<1x32xf32>
    %98 = arith.mulf %93, %97 : vector<1x32xf32>
    %c3_i32 = arith.constant 3 : i32
    %99 = vector.broadcast %c3_i32 : i32 to vector<8x32xi32>
    %100 = arith.cmpi eq, %10, %99 : vector<8x32xi32>
    %101 = vector.shape_cast %98 : vector<1x32xf32> to vector<1x32xf32>
    %102 = vector.broadcast %101 : vector<1x32xf32> to vector<8x32xf32>
    %103 = arith.select %100, %102, %80 : vector<8x32xi1>, vector<8x32xf32>
    %104 = vector.extract_strided_slice %8 {offsets = [4, 0], sizes = [1, 128], strides = [1, 1]} : vector<8x128xf32> to vector<1x128xf32>
    %cst_19 = arith.constant dense<0.000000e+00> : vector<1x128xf32>
    %105 = tpu.matmul %98, %9, %cst_19 {dimension_numbers = #tpu.dot_dimension_numbers<[1], [0], [0], [1], [0, 0, 1, 1], [], []>} : vector<1x32xf32>, vector<32x128xf32>, vector<1x128xf32> -> vector<1x128xf32>
    %106 = arith.addf %104, %105 : vector<1x128xf32>
    %107 = arith.negf %106 : vector<1x128xf32>
    %108 = math.exp %107 : vector<1x128xf32>
    %cst_20 = arith.constant 1.000000e+00 : f32
    %109 = vector.broadcast %cst_20 : f32 to vector<1x128xf32>
    %110 = arith.addf %109, %108 : vector<1x128xf32>
    %111 = arith.divf %109, %110 : vector<1x128xf32>
    %112 = math.tanh %106 : vector<1x128xf32>
    %113 = vector.extract_strided_slice %111 {offsets = [0, 0], sizes = [1, 32], strides = [1, 1]} : vector<1x128xf32> to vector<1x32xf32>
    %114 = vector.extract_strided_slice %111 {offsets = [0, 32], sizes = [1, 32], strides = [1, 1]} : vector<1x128xf32> to vector<1x32xf32>
    %115 = vector.extract_strided_slice %112 {offsets = [0, 64], sizes = [1, 32], strides = [1, 1]} : vector<1x128xf32> to vector<1x32xf32>
    %116 = vector.extract_strided_slice %111 {offsets = [0, 96], sizes = [1, 32], strides = [1, 1]} : vector<1x128xf32> to vector<1x32xf32>
    %117 = arith.mulf %114, %96 : vector<1x32xf32>
    %118 = arith.mulf %113, %115 : vector<1x32xf32>
    %119 = arith.addf %117, %118 : vector<1x32xf32>
    %120 = math.tanh %119 : vector<1x32xf32>
    %121 = arith.mulf %116, %120 : vector<1x32xf32>
    %c4_i32 = arith.constant 4 : i32
    %122 = vector.broadcast %c4_i32 : i32 to vector<8x32xi32>
    %123 = arith.cmpi eq, %10, %122 : vector<8x32xi32>
    %124 = vector.shape_cast %121 : vector<1x32xf32> to vector<1x32xf32>
    %125 = vector.broadcast %124 : vector<1x32xf32> to vector<8x32xf32>
    %126 = arith.select %123, %125, %103 : vector<8x32xi1>, vector<8x32xf32>
    %127 = vector.extract_strided_slice %8 {offsets = [5, 0], sizes = [1, 128], strides = [1, 1]} : vector<8x128xf32> to vector<1x128xf32>
    %cst_21 = arith.constant dense<0.000000e+00> : vector<1x128xf32>
    %128 = tpu.matmul %121, %9, %cst_21 {dimension_numbers = #tpu.dot_dimension_numbers<[1], [0], [0], [1], [0, 0, 1, 1], [], []>} : vector<1x32xf32>, vector<32x128xf32>, vector<1x128xf32> -> vector<1x128xf32>
    %129 = arith.addf %127, %128 : vector<1x128xf32>
    %130 = arith.negf %129 : vector<1x128xf32>
    %131 = math.exp %130 : vector<1x128xf32>
    %cst_22 = arith.constant 1.000000e+00 : f32
    %132 = vector.broadcast %cst_22 : f32 to vector<1x128xf32>
    %133 = arith.addf %132, %131 : vector<1x128xf32>
    %134 = arith.divf %132, %133 : vector<1x128xf32>
    %135 = math.tanh %129 : vector<1x128xf32>
    %136 = vector.extract_strided_slice %134 {offsets = [0, 0], sizes = [1, 32], strides = [1, 1]} : vector<1x128xf32> to vector<1x32xf32>
    %137 = vector.extract_strided_slice %134 {offsets = [0, 32], sizes = [1, 32], strides = [1, 1]} : vector<1x128xf32> to vector<1x32xf32>
    %138 = vector.extract_strided_slice %135 {offsets = [0, 64], sizes = [1, 32], strides = [1, 1]} : vector<1x128xf32> to vector<1x32xf32>
    %139 = vector.extract_strided_slice %134 {offsets = [0, 96], sizes = [1, 32], strides = [1, 1]} : vector<1x128xf32> to vector<1x32xf32>
    %140 = arith.mulf %137, %119 : vector<1x32xf32>
    %141 = arith.mulf %136, %138 : vector<1x32xf32>
    %142 = arith.addf %140, %141 : vector<1x32xf32>
    %143 = math.tanh %142 : vector<1x32xf32>
    %144 = arith.mulf %139, %143 : vector<1x32xf32>
    %c5_i32 = arith.constant 5 : i32
    %145 = vector.broadcast %c5_i32 : i32 to vector<8x32xi32>
    %146 = arith.cmpi eq, %10, %145 : vector<8x32xi32>
    %147 = vector.shape_cast %144 : vector<1x32xf32> to vector<1x32xf32>
    %148 = vector.broadcast %147 : vector<1x32xf32> to vector<8x32xf32>
    %149 = arith.select %146, %148, %126 : vector<8x32xi1>, vector<8x32xf32>
    %150 = vector.extract_strided_slice %8 {offsets = [6, 0], sizes = [1, 128], strides = [1, 1]} : vector<8x128xf32> to vector<1x128xf32>
    %cst_23 = arith.constant dense<0.000000e+00> : vector<1x128xf32>
    %151 = tpu.matmul %144, %9, %cst_23 {dimension_numbers = #tpu.dot_dimension_numbers<[1], [0], [0], [1], [0, 0, 1, 1], [], []>} : vector<1x32xf32>, vector<32x128xf32>, vector<1x128xf32> -> vector<1x128xf32>
    %152 = arith.addf %150, %151 : vector<1x128xf32>
    %153 = arith.negf %152 : vector<1x128xf32>
    %154 = math.exp %153 : vector<1x128xf32>
    %cst_24 = arith.constant 1.000000e+00 : f32
    %155 = vector.broadcast %cst_24 : f32 to vector<1x128xf32>
    %156 = arith.addf %155, %154 : vector<1x128xf32>
    %157 = arith.divf %155, %156 : vector<1x128xf32>
    %158 = math.tanh %152 : vector<1x128xf32>
    %159 = vector.extract_strided_slice %157 {offsets = [0, 0], sizes = [1, 32], strides = [1, 1]} : vector<1x128xf32> to vector<1x32xf32>
    %160 = vector.extract_strided_slice %157 {offsets = [0, 32], sizes = [1, 32], strides = [1, 1]} : vector<1x128xf32> to vector<1x32xf32>
    %161 = vector.extract_strided_slice %158 {offsets = [0, 64], sizes = [1, 32], strides = [1, 1]} : vector<1x128xf32> to vector<1x32xf32>
    %162 = vector.extract_strided_slice %157 {offsets = [0, 96], sizes = [1, 32], strides = [1, 1]} : vector<1x128xf32> to vector<1x32xf32>
    %163 = arith.mulf %160, %142 : vector<1x32xf32>
    %164 = arith.mulf %159, %161 : vector<1x32xf32>
    %165 = arith.addf %163, %164 : vector<1x32xf32>
    %166 = math.tanh %165 : vector<1x32xf32>
    %167 = arith.mulf %162, %166 : vector<1x32xf32>
    %c6_i32 = arith.constant 6 : i32
    %168 = vector.broadcast %c6_i32 : i32 to vector<8x32xi32>
    %169 = arith.cmpi eq, %10, %168 : vector<8x32xi32>
    %170 = vector.shape_cast %167 : vector<1x32xf32> to vector<1x32xf32>
    %171 = vector.broadcast %170 : vector<1x32xf32> to vector<8x32xf32>
    %172 = arith.select %169, %171, %149 : vector<8x32xi1>, vector<8x32xf32>
    %173 = vector.extract_strided_slice %8 {offsets = [7, 0], sizes = [1, 128], strides = [1, 1]} : vector<8x128xf32> to vector<1x128xf32>
    %cst_25 = arith.constant dense<0.000000e+00> : vector<1x128xf32>
    %174 = tpu.matmul %167, %9, %cst_25 {dimension_numbers = #tpu.dot_dimension_numbers<[1], [0], [0], [1], [0, 0, 1, 1], [], []>} : vector<1x32xf32>, vector<32x128xf32>, vector<1x128xf32> -> vector<1x128xf32>
    %175 = arith.addf %173, %174 : vector<1x128xf32>
    %176 = arith.negf %175 : vector<1x128xf32>
    %177 = math.exp %176 : vector<1x128xf32>
    %cst_26 = arith.constant 1.000000e+00 : f32
    %178 = vector.broadcast %cst_26 : f32 to vector<1x128xf32>
    %179 = arith.addf %178, %177 : vector<1x128xf32>
    %180 = arith.divf %178, %179 : vector<1x128xf32>
    %181 = math.tanh %175 : vector<1x128xf32>
    %182 = vector.extract_strided_slice %180 {offsets = [0, 0], sizes = [1, 32], strides = [1, 1]} : vector<1x128xf32> to vector<1x32xf32>
    %183 = vector.extract_strided_slice %180 {offsets = [0, 32], sizes = [1, 32], strides = [1, 1]} : vector<1x128xf32> to vector<1x32xf32>
    %184 = vector.extract_strided_slice %181 {offsets = [0, 64], sizes = [1, 32], strides = [1, 1]} : vector<1x128xf32> to vector<1x32xf32>
    %185 = vector.extract_strided_slice %180 {offsets = [0, 96], sizes = [1, 32], strides = [1, 1]} : vector<1x128xf32> to vector<1x32xf32>
    %186 = arith.mulf %183, %165 : vector<1x32xf32>
    %187 = arith.mulf %182, %184 : vector<1x32xf32>
    %188 = arith.addf %186, %187 : vector<1x32xf32>
    %189 = math.tanh %188 : vector<1x32xf32>
    %190 = arith.mulf %185, %189 : vector<1x32xf32>
    %c7_i32 = arith.constant 7 : i32
    %191 = vector.broadcast %c7_i32 : i32 to vector<8x32xi32>
    %192 = arith.cmpi eq, %10, %191 : vector<8x32xi32>
    %193 = vector.shape_cast %190 : vector<1x32xf32> to vector<1x32xf32>
    %194 = vector.broadcast %193 : vector<1x32xf32> to vector<8x32xf32>
    %195 = arith.select %192, %194, %172 : vector<8x32xi1>, vector<8x32xf32>
    %c0_27 = arith.constant 0 : index
    %c0_28 = arith.constant 0 : index
    %196 = vector.load %arg4[%c0_27, %c0_28] : memref<32x128xf32, #tpu.memory_space<vmem>>, vector<32x128xf32>
    %cst_29 = arith.constant dense<0.000000e+00> : vector<8x128xf32>
    %197 = tpu.matmul %195, %196, %cst_29 {dimension_numbers = #tpu.dot_dimension_numbers<[1], [0], [0], [1], [0, 0, 1, 1], [], []>} : vector<8x32xf32>, vector<32x128xf32>, vector<8x128xf32> -> vector<8x128xf32>
    %198 = vector.broadcast %1 : vector<1x128xf32> to vector<8x128xf32>
    %199 = arith.addf %197, %198 : vector<8x128xf32>
    %200 = tpu.iota {dimensions = array<i32: 1>} : vector<8x128xi32>
    %c8_i32 = arith.constant 8 : i32
    %201 = vector.broadcast %c8_i32 : i32 to vector<8x128xi32>
    %202 = arith.cmpi sge, %200, %201 : vector<8x128xi32>
    %c10_i32 = arith.constant 10 : i32
    %203 = vector.broadcast %c10_i32 : i32 to vector<8x128xi32>
    %204 = arith.cmpi slt, %200, %203 : vector<8x128xi32>
    %205 = arith.andi %202, %204 : vector<8x128xi1>
    %cst_30 = arith.constant 0xFF800000 : f32
    %206 = vector.broadcast %cst_30 : f32 to vector<8x128xf32>
    %207 = arith.select %205, %199, %206 : vector<8x128xi1>, vector<8x128xf32>
    %cst_31 = arith.constant dense<0xFF800000> : vector<8xf32>
    %208 = vector.multi_reduction <maximumf>, %207, %cst_31 [1] : vector<8x128xf32> to vector<8xf32>
    %209 = vector.shape_cast %208 : vector<8xf32> to vector<8x1xf32>
    %210 = vector.broadcast %209 : vector<8x1xf32> to vector<8x128xf32>
    %211 = arith.subf %207, %210 : vector<8x128xf32>
    %212 = math.exp %211 : vector<8x128xf32>
    %cst_32 = arith.constant dense<0.000000e+00> : vector<8xf32>
    %213 = vector.multi_reduction <add>, %212, %cst_32 [1] : vector<8x128xf32> to vector<8xf32>
    %214 = vector.shape_cast %213 : vector<8xf32> to vector<8x1xf32>
    %215 = math.log %214 : vector<8x1xf32>
    %216 = vector.broadcast %209 : vector<8x1xf32> to vector<8x128xf32>
    %217 = arith.subf %199, %216 : vector<8x128xf32>
    %218 = vector.broadcast %215 : vector<8x1xf32> to vector<8x128xf32>
    %219 = arith.subf %217, %218 : vector<8x128xf32>
    %220 = math.tanh %199 : vector<8x128xf32>
    %221 = arith.select %205, %219, %220 : vector<8x128xi1>, vector<8x128xf32>
    %c0_33 = arith.constant 0 : index
    %c0_34 = arith.constant 0 : index
    %222 = vector.load %arg6[%c0_33, %c0_34] : memref<8x128xf32, #tpu.memory_space<vmem>>, vector<8x128xf32>
    tpu.vector_store %arg6[%c0_33, %c0_34], %221 {strides = array<i32>} : memref<8x128xf32, #tpu.memory_space<vmem>>, vector<8x128xf32>,
    %c0_35 = arith.constant 0 : index
    %c0_36 = arith.constant 0 : index
    %223 = vector.load %arg7[%c0_35, %c0_36] : memref<1x32xf32, #tpu.memory_space<vmem>>, vector<1x32xf32>
    tpu.vector_store %arg7[%c0_35, %c0_36], %190 {strides = array<i32>} : memref<1x32xf32, #tpu.memory_space<vmem>>, vector<1x32xf32>,
    %c0_37 = arith.constant 0 : index
    %c0_38 = arith.constant 0 : index
    %224 = vector.load %arg8[%c0_37, %c0_38] : memref<1x32xf32, #tpu.memory_space<vmem>>, vector<1x32xf32>
    tpu.vector_store %arg8[%c0_37, %c0_38], %188 {strides = array<i32>} : memref<1x32xf32, #tpu.memory_space<vmem>>, vector<1x32xf32>,
    return
  }
  func.func @transform_0(%arg0: i32) -> (i32, i32) {
    %c0_i32 = arith.constant 0 : i32
    %c0_i32_0 = arith.constant 0 : i32
    %c0_i32_1 = arith.constant 0 : i32
    return %c0_i32, %c0_i32_0 : i32, i32
  }
  func.func @transform_1(%arg0: i32) -> (i32, i32) {
    %c0_i32 = arith.constant 0 : i32
    %c0_i32_0 = arith.constant 0 : i32
    %c0_i32_1 = arith.constant 0 : i32
    return %c0_i32, %c0_i32_0 : i32, i32
  }
  func.func @transform_2(%arg0: i32) -> (i32, i32) {
    %c0_i32 = arith.constant 0 : i32
    %c0_i32_0 = arith.constant 0 : i32
    %c0_i32_1 = arith.constant 0 : i32
    return %c0_i32, %c0_i32_0 : i32, i32
  }
  func.func @transform_3(%arg0: i32) -> (i32, i32) {
    %c0_i32 = arith.constant 0 : i32
    %c0_i32_0 = arith.constant 0 : i32
    %c0_i32_1 = arith.constant 0 : i32
    return %c0_i32, %c0_i32_0 : i32, i32
  }
  func.func @transform_4(%arg0: i32) -> (i32, i32) {
    %c0_i32 = arith.constant 0 : i32
    %c0_i32_0 = arith.constant 0 : i32
    %c0_i32_1 = arith.constant 0 : i32
    return %c0_i32, %c0_i32_0 : i32, i32
  }
  func.func @transform_5(%arg0: i32) -> (i32, i32) {
    %c0_i32 = arith.constant 0 : i32
    %c0_i32_0 = arith.constant 0 : i32
    %c0_i32_1 = arith.constant 0 : i32
    return %c0_i32, %c0_i32_0 : i32, i32
  }
  func.func @transform_6(%arg0: i32) -> (i32, i32) {
    %c0_i32 = arith.constant 0 : i32
    %c0_i32_0 = arith.constant 0 : i32
    %c0_i32_1 = arith.constant 0 : i32
    return %c0_i32, %c0_i32_0 : i32, i32
  }
  func.func @transform_7(%arg0: i32) -> (i32, i32) {
    %c0_i32 = arith.constant 0 : i32
    %c0_i32_0 = arith.constant 0 : i32
    %c0_i32_1 = arith.constant 0 : i32
    return %c0_i32, %c0_i32_0 : i32, i32
  }
}

</mosaic_0001>

<llo_original>
// kernel: lstm_tagger_forward.1
$region0: #{lstm_tagger_forward.1}
  #allocation0 [shape = 'u32[]', space=smem, size = 0x4, offset = 0x4, fixed_abs, tag = 'smem constant byte address 0x4 - core index']
  #allocation1 [shape = 'u32[72,128]{1,0:T(1,128)}', space=vmem, size = 0x9000, scoped, tag = 'internal scratch']
  %s0 = inlined_call_operand.vmem [shape: f32[8,16], index: 0, kind: input, shape index: {}]
  %s1 = inlined_call_operand.vmem [shape: f32[16,128], index: 1, kind: input, shape index: {}]
  %s2 = inlined_call_operand.vmem [shape: f32[32,128], index: 2, kind: input, shape index: {}]
  %s3 = inlined_call_operand.vmem [shape: f32[32,128], index: 3, kind: input, shape index: {}]
  %s4 = inlined_call_operand.vmem [shape: f32[8,128], index: 4, kind: input, shape index: {}]
  %s5 = inlined_call_operand.vmem [shape: f32[8,128], index: 5, kind: output, shape index: {0}]
  %s6 = inlined_call_operand.hbm [shape: f32[1,32], index: 6, kind: output, shape index: {1}]
  %s7 = inlined_call_operand.hbm [shape: f32[1,32], index: 7, kind: output, shape index: {2}]
  %8 = xla_tuple %s5, %s6, %s7
  %s9 = sld [smem:[#allocation0]]
  $region46: #{lstm_tagger_forward.1} parent=0
    _
  %s11 = ssub.s32 1, %s9
  %s12 = scalar_select 0, %s11, %s9
  $region1: #{lstm_tagger_forward.1} parent=0
    #allocation2 [shape = 'u8[512]{0}', space=vmem, size = 0x400, scoped, tag = 'output window, operand 1, single buffered']
    #allocation3 [shape = 's32[1]{0}', space=sflag, size = 0x4, scoped, tag = 'scoped memory for lstm_tagger_forward.1']
    #allocation4 [shape = 'u8[512]{0}', space=vmem, size = 0x400, scoped, tag = 'output window, operand 2, single buffered']
    #allocation5 [shape = 's32[1]{0}', space=sflag, size = 0x4, scoped, tag = 'scoped memory for lstm_tagger_forward.1']
    %13 = vsyncpa [#allocation3], 0
    %14 = vsyncpa [#allocation5], 0
    // Predicated region
    $region2: #{lstm_tagger_forward.1} parent=1 // pred_check
      _
    $region3: #{lstm_tagger_forward.1} parent=1 // pred_check_branch
      %16 = sbr.rel (0) target = $region5
    $region4: #{lstm_tagger_forward.1} parent=1 // pred_region
      _
    $region5: #{lstm_tagger_forward.1} parent=1 // pred_fallthru
      _
    // Predicated region
    $region6: #{lstm_tagger_forward.1} parent=1 // pred_check
      _
    $region7: #{lstm_tagger_forward.1} parent=1 // pred_check_branch
      %18 = sbr.rel (0) target = $region9
    $region8: #{lstm_tagger_forward.1} parent=1 // pred_region
      _
    $region9: #{lstm_tagger_forward.1} parent=1 // pred_fallthru
      _
    // Predicated region
    $region10: #{lstm_tagger_forward.1} parent=1 // pred_check
      _
    $region11: #{lstm_tagger_forward.1} parent=1 // pred_check_branch
      %20 = sbr.rel (0) target = $region13
    $region12: #{lstm_tagger_forward.1} parent=1 // pred_region
      _
    $region13: #{lstm_tagger_forward.1} parent=1 // pred_fallthru
      _
    // Predicated region
    $region14: #{lstm_tagger_forward.1} parent=1 // pred_check
      _
    $region15: #{lstm_tagger_forward.1} parent=1 // pred_check_branch
      %22 = sbr.rel (0) target = $region17
    $region16: #{lstm_tagger_forward.1} parent=1 // pred_region
      _
    $region17: #{lstm_tagger_forward.1} parent=1 // pred_fallthru
      _
    // Predicated region
    $region18: #{lstm_tagger_forward.1} parent=1 // pred_check
      _
    $region19: #{lstm_tagger_forward.1} parent=1 // pred_check_branch
      %24 = sbr.rel (0) target = $region21
    $region20: #{lstm_tagger_forward.1} parent=1 // pred_region
      _
    $region21: #{lstm_tagger_forward.1} parent=1 // pred_fallthru
      _
    %v25 = vld [vmem:[%s4] sm:$0x1]
    %v26 = vld [vmem:[%s4 + $0x1] sm:$0x1]
    %v27 = vld [vmem:[%s4 + $0x2] sm:$0x1]
    %v28 = vld [vmem:[%s4 + $0x3] sm:$0x1]
    %v29 = vld [vmem:[%s0] sm:$0xff]
    %v30 = vld [vmem:[%s1] sm:$0xff]
    %v31 = vld [vmem:[%s1 + $0x8] sm:$0xff]
    %v32 = vperm.slane %v25, 0
    %vm33 = vcmask 130048
    %v35 = vsel %vm33, %v29, 0
    %37 = vmatpush.msra.mxu0 0.0
    %38 = vmatpush.msra.mxu0 0.0
    %39 = vmatpush.msra.mxu0 0.0
    %40 = vmatpush.msra.mxu0 0.0
    %41 = vmatpush.msra.mxu0 0.0
    %42 = vmatpush.msra.mxu0 0.0
    %43 = vmatpush.msra.mxu0 0.0
    %44 = vmatpush.msra.mxu0 0.0
    %45 = vmatpush.msra.mxu0 0.0
    %46 = vmatpush.msra.mxu0 0.0
    %47 = vmatpush.msra.mxu0 0.0
    %48 = vmatpush.msra.mxu0 0.0
    %49 = vmatpush.msra.mxu0 0.0
    %50 = vmatpush.msra.mxu0 0.0
    %51 = vmatpush.msra.mxu0 %v31
    %52 = vmatpush.msra.mxu0 %v30
    %53 = vmatmul.f32.gmra.mxu0 %v35
    %v54 = vpop.f32.mrf.mxu0
    %v55 = vadd.f32 %v32, %v54
    %56 = vdwg.mxu0
    %v57 = vld [vmem:[%s2] sm:$0xff]
    %v58 = vld [vmem:[%s2 + $0x8] sm:$0xff]
    %v59 = vld [vmem:[%s2 + $0x10] sm:$0xff]
    %v60 = vld [vmem:[%s2 + $0x18] sm:$0xff]
    %v61 = vlaneseq
    %v62 = vshrl.u32 %v61, 7
    %vm63 = vcmask 261120
    %v65 = vsel %vm63, %v27, 0
    %67 = vmatpush.msra.mxu0 0.0
    %68 = vmatpush.msra.mxu0 0.0
    %69 = vmatpush.msra.mxu0 0.0
    %70 = vmatpush.msra.mxu0 0.0
    %71 = vmatpush.msra.mxu0 0.0
    %72 = vmatpush.msra.mxu0 0.0
    %73 = vmatpush.msra.mxu0 0.0
    %74 = vmatpush.msra.mxu0 0.0
    %75 = vmatpush.msra.mxu0 0.0
    %76 = vmatpush.msra.mxu0 0.0
    %77 = vmatpush.msra.mxu0 0.0
    %78 = vmatpush.msra.mxu0 0.0
    %79 = vmatpush.msra.mxu0 %v60
    %80 = vmatpush.msra.mxu0 %v59
    %81 = vmatpush.msra.mxu0 %v58
    %82 = vmatpush.msra.mxu0 %v57
    %83 = vmatmul.f32.gmra.mxu0 %v65
    %v84 = vpop.f32.mrf.mxu0
    %v85 = vadd.f32 0.0, %v84
    %86 = vdwg.mxu0
    %v87 = vadd.f32 %v55, %v85
    %v88 = vxor.u32 %v87, 2147483648
    %v89 = vmul.f32 %v88, 1.442695
    %v90 = vpow.pop %v89
    %v91 = vadd.f32 %v90, 1.0
    %v92 = vrcp.pop %v91
    %v93 = vmul.f32 %v91, %v92
    %v94 = vsub.f32 1.0, %v93
    %v95 = vmul.f32 %v92, %v94
    %v96 = vadd.f32 %v92, %v95
    %vm97 = vweird.f32 %v91
    %vm98 = vweird.f32 %v92
    %vm99 = vmor %vm97, %vm98
    %v100 = vsel %vm99, %v92, %v96
    %v101 = vand.u32 2147483647, %v91
    %vm102 = vcmp.eq.f32.partialorder %v101, 8.507059e+37
    %v103 = vand.u32 %v91, 2147483648
    %v104 = vor.u32 1.1754944e-38, %v103
    %v105 = vsel %vm102, %v104, %v100
    %v106 = vmul.f32 1.0, %v105
    %v107 = vtanh.pop %v87
    %109 = vrot.lane.b32.xlu0 %v28, 32
    %v110 = vpop.permute.xlu0 %109
    %v112 = vmul.f32 %v106, %v110
    %114 = vrot.lane.b32.xlu0 %v107, 64
    %v115 = vpop.permute.xlu0 %114
    %v117 = vmul.f32 %v106, %v115
    %119 = vrot.lane.b32.xlu0 %v117, 32
    %v120 = vpop.permute.xlu0 %119
    %v122 = vadd.f32 %v112, %v120
    %v123 = vtanh.pop %v122
    %125 = vrot.lane.b32.xlu0 %v123, 64
    %v126 = vpop.permute.xlu0 %125
    %v128 = vmul.f32 %v106, %v126
    %vm129 = vcmp.eq.s32.totalorder %v62, 0
    %v130 = vperm.slane %v128, 0
    %v131 = vsel %vm129, %v130, 0.0
    %133 = vrot.lane.b32.xlu0 %v128, 32
    %v134 = vpop.permute.xlu0 %133
    %v135 = vsel %vm63, %v134, 0
    %137 = vmatpush.msra.mxu0 0.0
    %138 = vmatpush.msra.mxu0 0.0
    %139 = vmatpush.msra.mxu0 0.0
    %140 = vmatpush.msra.mxu0 0.0
    %141 = vmatpush.msra.mxu0 0.0
    %142 = vmatpush.msra.mxu0 0.0
    %143 = vmatpush.msra.mxu0 0.0
    %144 = vmatpush.msra.mxu0 0.0
    %145 = vmatpush.msra.mxu0 0.0
    %146 = vmatpush.msra.mxu0 0.0
    %147 = vmatpush.msra.mxu0 0.0
    %148 = vmatpush.msra.mxu0 0.0
    %149 = vmatpush.msra.mxu0 %v60
    %150 = vmatpush.msra.mxu0 %v59
    %151 = vmatpush.msra.mxu0 %v58
    %152 = vmatpush.msra.mxu0 %v57
    %153 = vmatmul.f32.gmra.mxu0 %v135
    %v154 = vpop.f32.mrf.mxu0
    %v155 = vadd.f32 0.0, %v154
    %156 = vdwg.mxu0
    %v158 = vrot.slane %v155, 7
    %v160 = vadd.f32 %v55, %v158
    %v161 = vxor.u32 %v160, 2147483648
    %v162 = vmul.f32 %v161, 1.442695
    %v163 = vpow.pop %v162
    %v164 = vadd.f32 %v163, 1.0
    %v165 = vrcp.pop %v164
    %v166 = vmul.f32 %v164, %v165
    %v167 = vsub.f32 1.0, %v166
    %v168 = vmul.f32 %v165, %v167
    %v169 = vadd.f32 %v165, %v168
    %vm170 = vweird.f32 %v164
    %vm171 = vweird.f32 %v165
    %vm172 = vmor %vm170, %vm171
    %v173 = vsel %vm172, %v165, %v169
    %v174 = vand.u32 2147483647, %v164
    %vm175 = vcmp.eq.f32.partialorder %v174, 8.507059e+37
    %v176 = vand.u32 %v164, 2147483648
    %v177 = vor.u32 1.1754944e-38, %v176
    %v178 = vsel %vm175, %v177, %v173
    %v179 = vmul.f32 1.0, %v178
    %v180 = vtanh.pop %v160
    %v182 = vrot.slane %v122, 7
    %v184 = vmul.f32 %v179, %v182
    %186 = vrot.lane.b32.xlu0 %v180, 64
    %v187 = vpop.permute.xlu0 %186
    %v189 = vmul.f32 %v179, %v187
    %191 = vrot.lane.b32.xlu0 %v189, 32
    %v192 = vpop.permute.xlu0 %191
    %v194 = vadd.f32 %v184, %v192
    %v195 = vtanh.pop %v194
    %197 = vrot.lane.b32.xlu0 %v195, 64
    %v198 = vpop.permute.xlu0 %197
    %v200 = vmul.f32 %v179, %v198
    %vm201 = vcmp.eq.s32.totalorder %v62, 1
    %v202 = vperm.slane %v200, 1
    %v203 = vsel %vm201, %v202, %v131
    %v205 = vrot.slane %v200, 1
    %206 = vrot.lane.b32.xlu0 %v205, 32
    %v207 = vpop.permute.xlu0 %206
    %v208 = vsel %vm63, %v207, 0
    %210 = vmatpush.msra.mxu0 0.0
    %211 = vmatpush.msra.mxu0 0.0
    %212 = vmatpush.msra.mxu0 0.0
    %213 = vmatpush.msra.mxu0 0.0
    %214 = vmatpush.msra.mxu0 0.0
    %215 = vmatpush.msra.mxu0 0.0
    %216 = vmatpush.msra.mxu0 0.0
    %217 = vmatpush.msra.mxu0 0.0
    %218 = vmatpush.msra.mxu0 0.0
    %219 = vmatpush.msra.mxu0 0.0
    %220 = vmatpush.msra.mxu0 0.0
    %221 = vmatpush.msra.mxu0 0.0
    %222 = vmatpush.msra.mxu0 %v60
    %223 = vmatpush.msra.mxu0 %v59
    %224 = vmatpush.msra.mxu0 %v58
    %225 = vmatpush.msra.mxu0 %v57
    %226 = vmatmul.f32.gmra.mxu0 %v208
    %v227 = vpop.f32.mrf.mxu0
    %v228 = vadd.f32 0.0, %v227
    %229 = vdwg.mxu0
    %v231 = vrot.slane %v228, 6
    %v233 = vadd.f32 %v55, %v231
    %v234 = vxor.u32 %v233, 2147483648
    %v235 = vmul.f32 %v234, 1.442695
    %v236 = vpow.pop %v235
    %v237 = vadd.f32 %v236, 1.0
    %v238 = vrcp.pop %v237
    %v239 = vmul.f32 %v237, %v238
    %v240 = vsub.f32 1.0, %v239
    %v241 = vmul.f32 %v238, %v240
    %v242 = vadd.f32 %v238, %v241
    %vm243 = vweird.f32 %v237
    %vm244 = vweird.f32 %v238
    %vm245 = vmor %vm243, %vm244
    %v246 = vsel %vm245, %v238, %v242
    %v247 = vand.u32 2147483647, %v237
    %vm248 = vcmp.eq.f32.partialorder %v247, 8.507059e+37
    %v249 = vand.u32 %v237, 2147483648
    %v250 = vor.u32 1.1754944e-38, %v249
    %v251 = vsel %vm248, %v250, %v246
    %v252 = vmul.f32 1.0, %v251
    %v253 = vtanh.pop %v233
    %v255 = vrot.slane %v194, 7
    %v257 = vmul.f32 %v252, %v255
    %259 = vrot.lane.b32.xlu0 %v253, 64
    %v260 = vpop.permute.xlu0 %259
    %v262 = vmul.f32 %v252, %v260
    %264 = vrot.lane.b32.xlu0 %v262, 32
    %v265 = vpop.permute.xlu0 %264
    %v267 = vadd.f32 %v257, %v265
    %v268 = vtanh.pop %v267
    %270 = vrot.lane.b32.xlu0 %v268, 64
    %v271 = vpop.permute.xlu0 %270
    %v273 = vmul.f32 %v252, %v271
    %vm274 = vcmp.eq.s32.totalorder %v62, 2
    %v275 = vperm.slane %v273, 2
    %v276 = vsel %vm274, %v275, %v203
    %v278 = vrot.slane %v273, 2
    %279 = vrot.lane.b32.xlu0 %v278, 32
    %v280 = vpop.permute.xlu0 %279
    %v281 = vsel %vm63, %v280, 0
    %283 = vmatpush.msra.mxu0 0.0
    %284 = vmatpush.msra.mxu0 0.0
    %285 = vmatpush.msra.mxu0 0.0
    %286 = vmatpush.msra.mxu0 0.0
    %287 = vmatpush.msra.mxu0 0.0
    %288 = vmatpush.msra.mxu0 0.0
    %289 = vmatpush.msra.mxu0 0.0
    %290 = vmatpush.msra.mxu0 0.0
    %291 = vmatpush.msra.mxu0 0.0
    %292 = vmatpush.msra.mxu0 0.0
    %293 = vmatpush.msra.mxu0 0.0
    %294 = vmatpush.msra.mxu0 0.0
    %295 = vmatpush.msra.mxu0 %v60
    %296 = vmatpush.msra.mxu0 %v59
    %297 = vmatpush.msra.mxu0 %v58
    %298 = vmatpush.msra.mxu0 %v57
    %299 = vmatmul.f32.gmra.mxu0 %v281
    %v300 = vpop.f32.mrf.mxu0
    %v301 = vadd.f32 0.0, %v300
    %302 = vdwg.mxu0
    %v304 = vrot.slane %v301, 5
    %v306 = vadd.f32 %v55, %v304
    %v307 = vxor.u32 %v306, 2147483648
    %v308 = vmul.f32 %v307, 1.442695
    %v309 = vpow.pop %v308
    %v310 = vadd.f32 %v309, 1.0
    %v311 = vrcp.pop %v310
    %v312 = vmul.f32 %v310, %v311
    %v313 = vsub.f32 1.0, %v312
    %v314 = vmul.f32 %v311, %v313
    %v315 = vadd.f32 %v311, %v314
    %vm316 = vweird.f32 %v310
    %vm317 = vweird.f32 %v311
    %vm318 = vmor %vm316, %vm317
    %v319 = vsel %vm318, %v311, %v315
    %v320 = vand.u32 2147483647, %v310
    %vm321 = vcmp.eq.f32.partialorder %v320, 8.507059e+37
    %v322 = vand.u32 %v310, 2147483648
    %v323 = vor.u32 1.1754944e-38, %v322
    %v324 = vsel %vm321, %v323, %v319
    %v325 = vmul.f32 1.0, %v324
    %v326 = vtanh.pop %v306
    %v328 = vrot.slane %v267, 7
    %v330 = vmul.f32 %v325, %v328
    %332 = vrot.lane.b32.xlu0 %v326, 64
    %v333 = vpop.permute.xlu0 %332
    %v335 = vmul.f32 %v325, %v333
    %337 = vrot.lane.b32.xlu0 %v335, 32
    %v338 = vpop.permute.xlu0 %337
    %v340 = vadd.f32 %v330, %v338
    %v341 = vtanh.pop %v340
    %343 = vrot.lane.b32.xlu0 %v341, 64
    %v344 = vpop.permute.xlu0 %343
    %v346 = vmul.f32 %v325, %v344
    %vm347 = vcmp.eq.s32.totalorder %v62, 3
    %v348 = vperm.slane %v346, 3
    %v349 = vsel %vm347, %v348, %v276
    %v351 = vrot.slane %v346, 3
    %352 = vrot.lane.b32.xlu0 %v351, 32
    %v353 = vpop.permute.xlu0 %352
    %v354 = vsel %vm63, %v353, 0
    %356 = vmatpush.msra.mxu0 0.0
    %357 = vmatpush.msra.mxu0 0.0
    %358 = vmatpush.msra.mxu0 0.0
    %359 = vmatpush.msra.mxu0 0.0
    %360 = vmatpush.msra.mxu0 0.0
    %361 = vmatpush.msra.mxu0 0.0
    %362 = vmatpush.msra.mxu0 0.0
    %363 = vmatpush.msra.mxu0 0.0
    %364 = vmatpush.msra.mxu0 0.0
    %365 = vmatpush.msra.mxu0 0.0
    %366 = vmatpush.msra.mxu0 0.0
    %367 = vmatpush.msra.mxu0 0.0
    %368 = vmatpush.msra.mxu0 %v60
    %369 = vmatpush.msra.mxu0 %v59
    %370 = vmatpush.msra.mxu0 %v58
    %371 = vmatpush.msra.mxu0 %v57
    %372 = vmatmul.f32.gmra.mxu0 %v354
    %v373 = vpop.f32.mrf.mxu0
    %v374 = vadd.f32 0.0, %v373
    %375 = vdwg.mxu0
    %v377 = vrot.slane %v374, 4
    %v379 = vadd.f32 %v55, %v377
    %v380 = vxor.u32 %v379, 2147483648
    %v381 = vmul.f32 %v380, 1.442695
    %v382 = vpow.pop %v381
    %v383 = vadd.f32 %v382, 1.0
    %v384 = vrcp.pop %v383
    %v385 = vmul.f32 %v383, %v384
    %v386 = vsub.f32 1.0, %v385
    %v387 = vmul.f32 %v384, %v386
    %v388 = vadd.f32 %v384, %v387
    %vm389 = vweird.f32 %v383
    %vm390 = vweird.f32 %v384
    %vm391 = vmor %vm389, %vm390
    %v392 = vsel %vm391, %v384, %v388
    %v393 = vand.u32 2147483647, %v383
    %vm394 = vcmp.eq.f32.partialorder %v393, 8.507059e+37
    %v395 = vand.u32 %v383, 2147483648
    %v396 = vor.u32 1.1754944e-38, %v395
    %v397 = vsel %vm394, %v396, %v392
    %v398 = vmul.f32 1.0, %v397
    %v399 = vtanh.pop %v379
    %v401 = vrot.slane %v340, 7
    %v403 = vmul.f32 %v398, %v401
    %405 = vrot.lane.b32.xlu0 %v399, 64
    %v406 = vpop.permute.xlu0 %405
    %v408 = vmul.f32 %v398, %v406
    %410 = vrot.lane.b32.xlu0 %v408, 32
    %v411 = vpop.permute.xlu0 %410
    %v413 = vadd.f32 %v403, %v411
    %v414 = vtanh.pop %v413
    %416 = vrot.lane.b32.xlu0 %v414, 64
    %v417 = vpop.permute.xlu0 %416
    %v419 = vmul.f32 %v398, %v417
    %vm420 = vcmp.eq.s32.totalorder %v62, 4
    %v421 = vperm.slane %v419, 4
    %v422 = vsel %vm420, %v421, %v349
    %v424 = vrot.slane %v419, 4
    %425 = vrot.lane.b32.xlu0 %v424, 32
    %v426 = vpop.permute.xlu0 %425
    %v427 = vsel %vm63, %v426, 0
    %429 = vmatpush.msra.mxu0 0.0
    %430 = vmatpush.msra.mxu0 0.0
    %431 = vmatpush.msra.mxu0 0.0
    %432 = vmatpush.msra.mxu0 0.0
    %433 = vmatpush.msra.mxu0 0.0
    %434 = vmatpush.msra.mxu0 0.0
    %435 = vmatpush.msra.mxu0 0.0
    %436 = vmatpush.msra.mxu0 0.0
    %437 = vmatpush.msra.mxu0 0.0
    %438 = vmatpush.msra.mxu0 0.0
    %439 = vmatpush.msra.mxu0 0.0
    %440 = vmatpush.msra.mxu0 0.0
    %441 = vmatpush.msra.mxu0 %v60
    %442 = vmatpush.msra.mxu0 %v59
    %443 = vmatpush.msra.mxu0 %v58
    %444 = vmatpush.msra.mxu0 %v57
    %445 = vmatmul.f32.gmra.mxu0 %v427
    %v446 = vpop.f32.mrf.mxu0
    %v447 = vadd.f32 0.0, %v446
    %448 = vdwg.mxu0
    %v450 = vrot.slane %v447, 3
    %v452 = vadd.f32 %v55, %v450
    %v453 = vxor.u32 %v452, 2147483648
    %v454 = vmul.f32 %v453, 1.442695
    %v455 = vpow.pop %v454
    %v456 = vadd.f32 %v455, 1.0
    %v457 = vrcp.pop %v456
    %v458 = vmul.f32 %v456, %v457
    %v459 = vsub.f32 1.0, %v458
    %v460 = vmul.f32 %v457, %v459
    %v461 = vadd.f32 %v457, %v460
    %vm462 = vweird.f32 %v456
    %vm463 = vweird.f32 %v457
    %vm464 = vmor %vm462, %vm463
    %v465 = vsel %vm464, %v457, %v461
    %v466 = vand.u32 2147483647, %v456
    %vm467 = vcmp.eq.f32.partialorder %v466, 8.507059e+37
    %v468 = vand.u32 %v456, 2147483648
    %v469 = vor.u32 1.1754944e-38, %v468
    %v470 = vsel %vm467, %v469, %v465
    %v471 = vmul.f32 1.0, %v470
    %v472 = vtanh.pop %v452
    %v474 = vrot.slane %v413, 7
    %v476 = vmul.f32 %v471, %v474
    %478 = vrot.lane.b32.xlu0 %v472, 64
    %v479 = vpop.permute.xlu0 %478
    %v481 = vmul.f32 %v471, %v479
    %483 = vrot.lane.b32.xlu0 %v481, 32
    %v484 = vpop.permute.xlu0 %483
    %v486 = vadd.f32 %v476, %v484
    %v487 = vtanh.pop %v486
    %489 = vrot.lane.b32.xlu0 %v487, 64
    %v490 = vpop.permute.xlu0 %489
    %v492 = vmul.f32 %v471, %v490
    %vm493 = vcmp.eq.s32.totalorder %v62, 5
    %v494 = vperm.slane %v492, 5
    %v495 = vsel %vm493, %v494, %v422
    %v497 = vrot.slane %v492, 5
    %498 = vrot.lane.b32.xlu0 %v497, 32
    %v499 = vpop.permute.xlu0 %498
    %v500 = vsel %vm63, %v499, 0
    %502 = vmatpush.msra.mxu0 0.0
    %503 = vmatpush.msra.mxu0 0.0
    %504 = vmatpush.msra.mxu0 0.0
    %505 = vmatpush.msra.mxu0 0.0
    %506 = vmatpush.msra.mxu0 0.0
    %507 = vmatpush.msra.mxu0 0.0
    %508 = vmatpush.msra.mxu0 0.0
    %509 = vmatpush.msra.mxu0 0.0
    %510 = vmatpush.msra.mxu0 0.0
    %511 = vmatpush.msra.mxu0 0.0
    %512 = vmatpush.msra.mxu0 0.0
    %513 = vmatpush.msra.mxu0 0.0
    %514 = vmatpush.msra.mxu0 %v60
    %515 = vmatpush.msra.mxu0 %v59
    %516 = vmatpush.msra.mxu0 %v58
    %517 = vmatpush.msra.mxu0 %v57
    %518 = vmatmul.f32.gmra.mxu0 %v500
    %v519 = vpop.f32.mrf.mxu0
    %v520 = vadd.f32 0.0, %v519
    %521 = vdwg.mxu0
    %v523 = vrot.slane %v520, 2
    %v525 = vadd.f32 %v55, %v523
    %v526 = vxor.u32 %v525, 2147483648
    %v527 = vmul.f32 %v526, 1.442695
    %v528 = vpow.pop %v527
    %v529 = vadd.f32 %v528, 1.0
    %v530 = vrcp.pop %v529
    %v531 = vmul.f32 %v529, %v530
    %v532 = vsub.f32 1.0, %v531
    %v533 = vmul.f32 %v530, %v532
    %v534 = vadd.f32 %v530, %v533
    %vm535 = vweird.f32 %v529
    %vm536 = vweird.f32 %v530
    %vm537 = vmor %vm535, %vm536
    %v538 = vsel %vm537, %v530, %v534
    %v539 = vand.u32 2147483647, %v529
    %vm540 = vcmp.eq.f32.partialorder %v539, 8.507059e+37
    %v541 = vand.u32 %v529, 2147483648
    %v542 = vor.u32 1.1754944e-38, %v541
    %v543 = vsel %vm540, %v542, %v538
    %v544 = vmul.f32 1.0, %v543
    %v545 = vtanh.pop %v525
    %v547 = vrot.slane %v486, 7
    %v549 = vmul.f32 %v544, %v547
    %551 = vrot.lane.b32.xlu0 %v545, 64
    %v552 = vpop.permute.xlu0 %551
    %v554 = vmul.f32 %v544, %v552
    %556 = vrot.lane.b32.xlu0 %v554, 32
    %v557 = vpop.permute.xlu0 %556
    %v559 = vadd.f32 %v549, %v557
    %v560 = vtanh.pop %v559
    %562 = vrot.lane.b32.xlu0 %v560, 64
    %v563 = vpop.permute.xlu0 %562
    %v565 = vmul.f32 %v544, %v563
    %vm566 = vcmp.eq.s32.totalorder %v62, 6
    %v567 = vperm.slane %v565, 6
    %v568 = vsel %vm566, %v567, %v495
    %v570 = vrot.slane %v565, 6
    %571 = vrot.lane.b32.xlu0 %v570, 32
    %v572 = vpop.permute.xlu0 %571
    %v573 = vsel %vm63, %v572, 0
    %575 = vmatpush.msra.mxu0 0.0
    %576 = vmatpush.msra.mxu0 0.0
    %577 = vmatpush.msra.mxu0 0.0
    %578 = vmatpush.msra.mxu0 0.0
    %579 = vmatpush.msra.mxu0 0.0
    %580 = vmatpush.msra.mxu0 0.0
    %581 = vmatpush.msra.mxu0 0.0
    %582 = vmatpush.msra.mxu0 0.0
    %583 = vmatpush.msra.mxu0 0.0
    %584 = vmatpush.msra.mxu0 0.0
    %585 = vmatpush.msra.mxu0 0.0
    %586 = vmatpush.msra.mxu0 0.0
    %587 = vmatpush.msra.mxu0 %v60
    %588 = vmatpush.msra.mxu0 %v59
    %589 = vmatpush.msra.mxu0 %v58
    %590 = vmatpush.msra.mxu0 %v57
    %591 = vmatmul.f32.gmra.mxu0 %v573
    %v592 = vpop.f32.mrf.mxu0
    %v593 = vadd.f32 0.0, %v592
    %594 = vdwg.mxu0
    %v596 = vrot.slane %v593, 1
    %v598 = vadd.f32 %v55, %v596
    %v599 = vxor.u32 %v598, 2147483648
    %v600 = vmul.f32 %v599, 1.442695
    %v601 = vpow.pop %v600
    %v602 = vadd.f32 %v601, 1.0
    %v603 = vrcp.pop %v602
    %v604 = vmul.f32 %v602, %v603
    %v605 = vsub.f32 1.0, %v604
    %v606 = vmul.f32 %v603, %v605
    %v607 = vadd.f32 %v603, %v606
    %vm608 = vweird.f32 %v602
    %vm609 = vweird.f32 %v603
    %vm610 = vmor %vm608, %vm609
    %v611 = vsel %vm610, %v603, %v607
    %v612 = vand.u32 2147483647, %v602
    %vm613 = vcmp.eq.f32.partialorder %v612, 8.507059e+37
    %v614 = vand.u32 %v602, 2147483648
    %v615 = vor.u32 1.1754944e-38, %v614
    %v616 = vsel %vm613, %v615, %v611
    %v617 = vmul.f32 1.0, %v616
    %v618 = vtanh.pop %v598
    %v620 = vrot.slane %v559, 7
    %v622 = vmul.f32 %v617, %v620
    %624 = vrot.lane.b32.xlu0 %v618, 64
    %v625 = vpop.permute.xlu0 %624
    %v627 = vmul.f32 %v617, %v625
    %629 = vrot.lane.b32.xlu0 %v627, 32
    %v630 = vpop.permute.xlu0 %629
    %v632 = vadd.f32 %v622, %v630
    %v633 = vtanh.pop %v632
    %635 = vrot.lane.b32.xlu0 %v633, 64
    %v636 = vpop.permute.xlu0 %635
    %v638 = vmul.f32 %v617, %v636
    %vm639 = vcmp.eq.s32.totalorder %v62, 7
    %v640 = vperm.slane %v638, 7
    %v641 = vsel %vm639, %v640, %v568
    %v642 = vld [vmem:[%s3] sm:$0xff]
    %v643 = vld [vmem:[%s3 + $0x8] sm:$0xff]
    %v644 = vld [vmem:[%s3 + $0x10] sm:$0xff]
    %v645 = vld [vmem:[%s3 + $0x18] sm:$0xff]
    %v646 = vperm.slane %v26, 0
    %648 = vrot.lane.b32.xlu0 %v641, 32
    %v649 = vpop.permute.xlu0 %648
    %v650 = vsel %vm63, %v649, 0
    %652 = vmatpush.msra.mxu0 0.0
    %653 = vmatpush.msra.mxu0 0.0
    %654 = vmatpush.msra.mxu0 0.0
    %655 = vmatpush.msra.mxu0 0.0
    %656 = vmatpush.msra.mxu0 0.0
    %657 = vmatpush.msra.mxu0 0.0
    %658 = vmatpush.msra.mxu0 0.0
    %659 = vmatpush.msra.mxu0 0.0
    %660 = vmatpush.msra.mxu0 0.0
    %661 = vmatpush.msra.mxu0 0.0
    %662 = vmatpush.msra.mxu0 0.0
    %663 = vmatpush.msra.mxu0 0.0
    %664 = vmatpush.msra.mxu0 %v645
    %665 = vmatpush.msra.mxu0 %v644
    %666 = vmatpush.msra.mxu0 %v643
    %667 = vmatpush.msra.mxu0 %v642
    %668 = vmatmul.f32.gmra.mxu0 %v650
    %v669 = vpop.f32.mrf.mxu0
    %v670 = vadd.f32 %v646, %v669
    %671 = vdwg.mxu0
    %v672 = vlaneseq
    %v673 = vand.u32 %v672, 127
    %vm674 = vcmp.ge.s32.totalorder %v673, 8
    %vm675 = vcmp.lt.s32.totalorder %v673, 10
    %vm676 = vmand %vm674, %vm675
    %v677 = vsel %vm676, %v670, -inf
    %678 = vmax.xlane.f32.xlu0 %v677
    %v679 = vpop.xlane.xlu0 %678
    %v680 = vsub.f32 %v677, %v679
    %v681 = vmul.f32 %v680, 1.442695
    %v682 = vpow.pop %v681
    %683 = vadd.xlane.f32.xlu0 %v682
    %v684 = vpop.xlane.xlu0 %683
    %v685 = vlog2.pop %v684
    %v686 = vmul.f32 %v685, 0.6931472
    %v687 = vsub.f32 %v670, %v679
    %v688 = vsub.f32 %v687, %v686
    %v689 = vtanh.pop %v670
    %v690 = vsel %vm676, %v688, %v689
    %691 = vst [vmem:[%s5] sm:$0xff] %v690
    %693 = vrot.lane.b32.xlu0 %v638, 32
    %v694 = vpop.permute.xlu0 %693
    %vm696 = vcmask 261127
    %697 = vst.msk [vmem:[#allocation2 - $0x7] sm:$0x80] %vm696, %v694
    %699 = vrot.lane.b32.xlu0 %v632, 96
    %v700 = vpop.permute.xlu0 %699
    %702 = vst.msk [vmem:[#allocation4 - $0x7] sm:$0x80] %vm696, %v700
    // Predicated region
    $region22: #{lstm_tagger_forward.1} parent=1 // pred_check
      _
    $region23: #{lstm_tagger_forward.1} parent=1 // pred_check_branch
      %704 = sbr.rel (0) target = $region25
    $region24: #{lstm_tagger_forward.1} parent=1 // pred_region
      _
    $region25: #{lstm_tagger_forward.1} parent=1 // pred_fallthru
      _
    // Predicated region
    $region26: #{lstm_tagger_forward.1} parent=1 // pred_check
      _
    $region27: #{lstm_tagger_forward.1} parent=1 // pred_check_branch
      %706 = sbr.rel (0) target = $region29
    $region28: #{lstm_tagger_forward.1} parent=1 // pred_region
      %708 = vsyncadd [#allocation3], 0
      %s710 = sshll.u32 [#allocation2], 4
      %s711 = int_to_ptr.vmem [resolvable:$true] %s710
      %s712 = sshll.u32 %s6, 4
      %s713 = int_to_ptr.hbm [resolvable:$true] %s712
      %715 = dma.vmem_to_hbm [thread:$0]  %s711, 16, %s713, [#allocation3]
    $region29: #{lstm_tagger_forward.1} parent=1 // pred_fallthru
      _
    // Predicated region
    $region30: #{lstm_tagger_forward.1} parent=1 // pred_check
      _
    $region31: #{lstm_tagger_forward.1} parent=1 // pred_check_branch
      %717 = sbr.rel (0) target = $region33
    $region32: #{lstm_tagger_forward.1} parent=1 // pred_region
      %719 = vsyncadd [#allocation5], 0
      %s721 = sshll.u32 [#allocation4], 4
      %s722 = int_to_ptr.vmem [resolvable:$true] %s721
      %s723 = sshll.u32 %s7, 4
      %s724 = int_to_ptr.hbm [resolvable:$true] %s723
      %726 = dma.vmem_to_hbm [thread:$0]  %s722, 16, %s724, [#allocation5]
    $region33: #{lstm_tagger_forward.1} parent=1 // pred_fallthru
      _
    // Predicated region
    $region34: #{lstm_tagger_forward.1} parent=1 // pred_check
      _
    $region35: #{lstm_tagger_forward.1} parent=1 // pred_check_branch
      %728 = sbr.rel (0) target = $region37
    $region36: #{lstm_tagger_forward.1} parent=1 // pred_region
      _
    $region37: #{lstm_tagger_forward.1} parent=1 // pred_fallthru
      _
    // Predicated region
    $region38: #{lstm_tagger_forward.1} parent=1 // pred_check
      _
    $region39: #{lstm_tagger_forward.1} parent=1 // pred_check_branch
      %730 = sbr.rel (0) target = $region41
    $region40: #{lstm_tagger_forward.1} parent=1 // pred_region
      %732 = dma.done [#allocation3], 16
    $region41: #{lstm_tagger_forward.1} parent=1 // pred_fallthru
      _
    // Predicated region
    $region42: #{lstm_tagger_forward.1} parent=1 // pred_check
      _
    $region43: #{lstm_tagger_forward.1} parent=1 // pred_check_branch
      %734 = sbr.rel (0) target = $region45
    $region44: #{lstm_tagger_forward.1} parent=1 // pred_region
      %736 = dma.done [#allocation5], 16
    $region45: #{lstm_tagger_forward.1} parent=1 // pred_fallthru
      _
    %737 = vsyncpa [#allocation3], 1
    %738 = vsyncpa [#allocation5], 1

</llo_original>
